<compile_context>
chip_gen: v5e
topology: v5e:2x2
jax: 0.10.0
libtpu: 0.0.40
codegen_flags: <defaults>
</compile_context>

<pallas_src>
import functools

import jax
import jax.numpy as jnp
from jax.experimental import pallas as pl
from jax.experimental.pallas import tpu as pltpu

EPS = 1e-5
NEG_SLOPE = 0.2


def _leaky(h):
    return jnp.where(h >= 0, h, NEG_SLOPE * h)


def _layer1_matmul(w1, x):
    """(H, K) @ (K, TB) with tiny K: unrolled VPU outer-product FMAs."""
    k_dim = w1.shape[1]
    if k_dim <= 8:
        acc = w1[:, 0:1] * x[0:1, :]
        for k in range(1, k_dim):
            acc = acc + w1[:, k:k + 1] * x[k:k + 1, :]
        return acc
    return jnp.dot(w1, x, preferred_element_type=jnp.float32)


# ---------------------------------------------------------------------------
# Pass 1: per-feature sum / sum-of-squares of h1 = W1 @ x   (BN1 statistics).
# ---------------------------------------------------------------------------
def _stats1_kernel(x_ref, w1_ref, sum_ref, sq_ref):
    bt = pl.program_id(0)

    @pl.when(bt == 0)
    def _():
        sum_ref[...] = jnp.zeros_like(sum_ref)
        sq_ref[...] = jnp.zeros_like(sq_ref)

    h1 = _layer1_matmul(w1_ref[...], x_ref[...])            # (H, TB)
    # Padded batch columns are zero-filled -> h1 == 0 there -> no mask needed.
    sum_ref[...] += jnp.sum(h1, axis=1, keepdims=True)
    sq_ref[...] += jnp.sum(h1 * h1, axis=1, keepdims=True)


# ---------------------------------------------------------------------------
# Pass 2: per-feature sum / sum-of-squares of h2 = W2 @ leaky(aff1(h1)).
# ---------------------------------------------------------------------------
def _stats2_kernel(x_ref, w1_ref, w2_ref, aff1_ref, sum_ref, sq_ref,
                   *, true_batch, batch_tile, needs_mask):
    bt = pl.program_id(0)

    @pl.when(bt == 0)
    def _():
        sum_ref[...] = jnp.zeros_like(sum_ref)
        sq_ref[...] = jnp.zeros_like(sq_ref)

    hidden = w1_ref.shape[0]
    scale1 = aff1_ref[0:hidden, :]
    shift1 = aff1_ref[hidden:2 * hidden, :]

    h1 = _layer1_matmul(w1_ref[...], x_ref[...])            # (H, TB)
    a1 = _leaky(h1 * scale1 + shift1)
    if needs_mask:
        col = bt * batch_tile + jax.lax.broadcasted_iota(
            jnp.int32, (1, batch_tile), 1)
        a1 = jnp.where(col < true_batch, a1, 0.0)           # kill padded cols
    h2 = jnp.dot(w2_ref[...], a1, preferred_element_type=jnp.float32)
    sum_ref[...] += jnp.sum(h2, axis=1, keepdims=True)
    sq_ref[...] += jnp.sum(h2 * h2, axis=1, keepdims=True)


# ---------------------------------------------------------------------------
# Pass 3: full forward with folded BN affines -- pure per-column, "parallel".
# ---------------------------------------------------------------------------
def _forward_kernel(x_ref, w1_ref, w2_ref, w3_ref, vec_ref, o_ref):
    hidden = w1_ref.shape[0]
    d_out = w3_ref.shape[0]
    scale1 = vec_ref[0:hidden, :]
    shift1 = vec_ref[hidden:2 * hidden, :]
    scale2 = vec_ref[2 * hidden:3 * hidden, :]
    shift2 = vec_ref[3 * hidden:4 * hidden, :]
    bias3 = vec_ref[4 * hidden:4 * hidden + d_out, :]

    x = x_ref[...]
    h1 = _layer1_matmul(w1_ref[...], x)
    a1 = _leaky(h1 * scale1 + shift1)
    h2 = jnp.dot(w2_ref[...], a1, preferred_element_type=jnp.float32)
    a2 = _leaky(h2 * scale2 + shift2)
    out = jnp.dot(w3_ref[...], a2, preferred_element_type=jnp.float32) + bias3
    o_ref[...] = out.astype(o_ref.dtype)


def decoder_forward(x, params, *, batch_tile=512):
    """Forward pass of the Decoder (training-mode BatchNorm).

    x:      (B, K) float32, same layout as the PyTorch module.
    params: (w1, gamma1, beta1, w2, gamma2, beta2, w3, bias3) in PyTorch
            shapes: w1 (H, K), w2 (H, H), w3 (D, H), vectors 1-D.
    Returns (B, D) float32.
    """
    w1, g1, b1, w2, g2, b2, w3, bias3 = params
    B, K = x.shape
    H = w1.shape[0]
    D = w3.shape[0]

    # TODO(synk): optionally cast w2/w3 to bfloat16 on v6e/v7x (halves weight
    # DMA/VMEM); kept f32 here so the demo matches the f32 reference tightly.

    # ---- layout: batch on the lane axis, tiled over a 1-D grid -------------
    if B <= batch_tile:
        tb, b_pad = B, B
    else:
        tb = batch_tile                       # multiple of 128
        b_pad = -(-B // tb) * tb
    nb = b_pad // tb
    needs_mask = b_pad != B

    x_t = x.T.astype(jnp.float32)             # (K, B)
    if needs_mask:
        x_t = jnp.pad(x_t, ((0, 0), (0, b_pad - B)))

    col = lambda v: v.reshape(-1, 1).astype(jnp.float32)

    x_spec = pl.BlockSpec((K, tb), lambda i: (0, i))
    resident = lambda a: pl.BlockSpec(a.shape, lambda i: (0, 0))
    stat_spec = pl.BlockSpec((H, 1), lambda i: (0, 0))
    stat_shape = (jax.ShapeDtypeStruct((H, 1), jnp.float32),) * 2
    reduce_params = pltpu.CompilerParams(dimension_semantics=("arbitrary",))

    # ---- pass 1: BN1 batch statistics --------------------------------------
    s1, q1 = pl.pallas_call(
        _stats1_kernel,
        out_shape=stat_shape,
        grid=(nb,),
        in_specs=[x_spec, resident(w1)],
        out_specs=(stat_spec, stat_spec),
        compiler_params=reduce_params,
    )(x_t, w1)
    mean1 = s1 / B
    var1 = jnp.maximum(q1 / B - mean1 * mean1, 0.0)
    scale1 = col(g1) * jax.lax.rsqrt(var1 + EPS)
    shift1 = col(b1) - mean1 * scale1
    aff1 = jnp.concatenate([scale1, shift1], axis=0)          # (2H, 1)

    # ---- pass 2: BN2 batch statistics --------------------------------------
    s2, q2 = pl.pallas_call(
        functools.partial(_stats2_kernel, true_batch=B, batch_tile=tb,
                          needs_mask=needs_mask),
        out_shape=stat_shape,
        grid=(nb,),
        in_specs=[x_spec, resident(w1), resident(w2), resident(aff1)],
        out_specs=(stat_spec, stat_spec),
        compiler_params=reduce_params,
    )(x_t, w1, w2, aff1)
    mean2 = s2 / B
    var2 = jnp.maximum(q2 / B - mean2 * mean2, 0.0)
    scale2 = col(g2) * jax.lax.rsqrt(var2 + EPS)
    shift2 = col(b2) - mean2 * scale2

    # ---- pass 3: main forward (fully parallel over batch tiles) ------------
    vec = jnp.concatenate([scale1, shift1, scale2, shift2, col(bias3)], axis=0)

    flops = 2 * b_pad * (K * H + H * H + H * D) + 8 * b_pad * H
    bytes_accessed = 4 * (K * b_pad + D * b_pad + K * H + H * H + H * D
                          + 4 * H + D)

    out_t = pl.pallas_call(
        _forward_kernel,
        out_shape=jax.ShapeDtypeStruct((D, b_pad), jnp.float32),
        grid=(nb,),
        in_specs=[x_spec, resident(w1), resident(w2), resident(w3),
                  resident(vec)],
        out_specs=pl.BlockSpec((D, tb), lambda i: (0, i)),
        compiler_params=pltpu.CompilerParams(
            dimension_semantics=("parallel",)),
        cost_estimate=pl.CostEstimate(flops=flops, transcendentals=0,
                                      bytes_accessed=bytes_accessed),
    )(x_t, w1, w2, w3, vec)

    return out_t[:, :B].T                                     # (B, D)


def decoder_reference(x, params):
    """Pure-JAX mirror of the PyTorch module (training-mode BatchNorm)."""
    w1, g1, b1, w2, g2, b2, w3, bias3 = params

    def bn_leaky(h, gamma, beta):
        mean = jnp.mean(h, axis=0, keepdims=True)
        var = jnp.mean((h - mean) ** 2, axis=0, keepdims=True)
        hn = (h - mean) * jax.lax.rsqrt(var + EPS) * gamma + beta
        return jnp.where(hn >= 0, hn, NEG_SLOPE * hn)

    h = bn_leaky(x @ w1.T, g1, b1)
    h = bn_leaky(h @ w2.T, g2, b2)
    return h @ w3.T + bias3


def init_params(key, k_selected, hidden_dim, input_dim):
    ks = jax.random.split(key, 8)
    # PyTorch Linear weight layout: (out_features, in_features).
    w1 = jax.random.normal(ks[0], (hidden_dim, k_selected), jnp.float32) * 0.2
    w2 = jax.random.normal(ks[1], (hidden_dim, hidden_dim), jnp.float32) * 0.2
    w3 = jax.random.normal(ks[2], (input_dim, hidden_dim), jnp.float32) * 0.2
    bias3 = jax.random.normal(ks[3], (input_dim,), jnp.float32) * 0.1
    # BatchNorm affine params (perturbed from the default 1/0 to exercise them).
    g1 = 1.0 + 0.1 * jax.random.normal(ks[4], (hidden_dim,), jnp.float32)
    b1 = 0.1 * jax.random.normal(ks[5], (hidden_dim,), jnp.float32)
    g2 = 1.0 + 0.1 * jax.random.normal(ks[6], (hidden_dim,), jnp.float32)
    b2 = 0.1 * jax.random.normal(ks[7], (hidden_dim,), jnp.float32)
    return (w1, g1, b1, w2, g2, b2, w3, bias3)


if __name__ == "__main__":
    # cfg.k_selected=4, cfg.hidden_dim=32, cfg.input_dim=16
    K, H, D = 4, 32, 16
    key = jax.random.PRNGKey(0)
    kx, kp, kx2 = jax.random.split(key, 3)
    params = init_params(kp, K, H, D)

    # Small single-tile case (B=8, no padding).
    B = 8
    x = jax.random.normal(kx, (B, K), jnp.float32)
    out = jax.block_until_ready(decoder_forward(x, params))
    ref = decoder_reference(x, params)
    assert out.shape == (B, D)
    assert jnp.allclose(out, ref, atol=1e-4, rtol=1e-3), \
        float(jnp.max(jnp.abs(out - ref)))

    # Tiled + padded case (B=300, 128-column tiles, masked stats).
    B2 = 300
    x2 = jax.random.normal(kx2, (B2, K), jnp.float32)
    out2 = jax.block_until_ready(decoder_forward(x2, params, batch_tile=128))
    ref2 = decoder_reference(x2, params)
    assert out2.shape == (B2, D)
    assert jnp.allclose(out2, ref2, atol=1e-4, rtol=1e-3), \
        float(jnp.max(jnp.abs(out2 - ref2)))

    print("KERNEL_OK")
</pallas_src>

<mosaic_0001>
module attributes {stable_mosaic.version = 11 : i64} {
  func.func @_stats1_kernel(%arg0: i32, %arg1: memref<4x8xf32, #tpu.memory_space<vmem>>, %arg2: memref<32x4xf32, #tpu.memory_space<vmem>>, %arg3: memref<32x1xf32, #tpu.memory_space<vmem>>, %arg4: memref<32x1xf32, #tpu.memory_space<vmem>>) attributes {dimension_semantics = [#tpu.dimension_semantics<arbitrary>], iteration_bounds = array<i64: 1>, scalar_prefetch = 0 : i64, scratch_operands = 0 : i64, tpu.core_type = #tpu.core_type<tc>, window_params = [{transform_indices = @transform_0, window_bounds = array<i64: 4, 8>}, {pipeline_mode = #tpu.pipeline_mode<synchronous>, transform_indices = @transform_1, window_bounds = array<i64: 32, 4>}, {pipeline_mode = #tpu.pipeline_mode<synchronous>, transform_indices = @transform_2, window_bounds = array<i64: 32, 1>}, {pipeline_mode = #tpu.pipeline_mode<synchronous>, transform_indices = @transform_3, window_bounds = array<i64: 32, 1>}]} {
    %c0_i32 = arith.constant 0 : i32
    %0 = arith.cmpi eq, %arg0, %c0_i32 : i32
    %1 = arith.extui %0 : i1 to i32
    %c0_i32_0 = arith.constant 0 : i32
    %2 = arith.cmpi ne, %1, %c0_i32_0 : i32
    scf.if %2 {
      %cst_13 = arith.constant 0.000000e+00 : f32
      %39 = vector.broadcast %cst_13 : f32 to vector<32x1xf32>
      %c0_14 = arith.constant 0 : index
      %c0_15 = arith.constant 0 : index
      %40 = vector.load %arg3[%c0_14, %c0_15] : memref<32x1xf32, #tpu.memory_space<vmem>>, vector<32x1xf32>
      tpu.vector_store %arg3[%c0_14, %c0_15], %39 {strides = array<i32>} : memref<32x1xf32, #tpu.memory_space<vmem>>, vector<32x1xf32>,
      %cst_16 = arith.constant 0.000000e+00 : f32
      %41 = vector.broadcast %cst_16 : f32 to vector<32x1xf32>
      %c0_17 = arith.constant 0 : index
      %c0_18 = arith.constant 0 : index
      %42 = vector.load %arg4[%c0_17, %c0_18] : memref<32x1xf32, #tpu.memory_space<vmem>>, vector<32x1xf32>
      tpu.vector_store %arg4[%c0_17, %c0_18], %41 {strides = array<i32>} : memref<32x1xf32, #tpu.memory_space<vmem>>, vector<32x1xf32>,
    } else {
    }
    %c0 = arith.constant 0 : index
    %c0_1 = arith.constant 0 : index
    %3 = vector.load %arg2[%c0, %c0_1] : memref<32x4xf32, #tpu.memory_space<vmem>>, vector<32x4xf32>
    %c0_2 = arith.constant 0 : index
    %c0_3 = arith.constant 0 : index
    %4 = vector.load %arg1[%c0_2, %c0_3] : memref<4x8xf32, #tpu.memory_space<vmem>>, vector<4x8xf32>
    %5 = vector.extract_strided_slice %3 {offsets = [0, 0], sizes = [32, 1], strides = [1, 1]} : vector<32x4xf32> to vector<32x1xf32>
    %6 = vector.extract_strided_slice %4 {offsets = [0, 0], sizes = [1, 8], strides = [1, 1]} : vector<4x8xf32> to vector<1x8xf32>
    %7 = vector.broadcast %5 : vector<32x1xf32> to vector<32x8xf32>
    %8 = vector.broadcast %6 : vector<1x8xf32> to vector<32x8xf32>
    %9 = arith.mulf %7, %8 : vector<32x8xf32>
    %10 = vector.extract_strided_slice %3 {offsets = [0, 1], sizes = [32, 1], strides = [1, 1]} : vector<32x4xf32> to vector<32x1xf32>
    %11 = vector.extract_strided_slice %4 {offsets = [1, 0], sizes = [1, 8], strides = [1, 1]} : vector<4x8xf32> to vector<1x8xf32>
    %12 = vector.broadcast %10 : vector<32x1xf32> to vector<32x8xf32>
    %13 = vector.broadcast %11 : vector<1x8xf32> to vector<32x8xf32>
    %14 = arith.mulf %12, %13 : vector<32x8xf32>
    %15 = arith.addf %9, %14 : vector<32x8xf32>
    %16 = vector.extract_strided_slice %3 {offsets = [0, 2], sizes = [32, 1], strides = [1, 1]} : vector<32x4xf32> to vector<32x1xf32>
    %17 = vector.extract_strided_slice %4 {offsets = [2, 0], sizes = [1, 8], strides = [1, 1]} : vector<4x8xf32> to vector<1x8xf32>
    %18 = vector.broadcast %16 : vector<32x1xf32> to vector<32x8xf32>
    %19 = vector.broadcast %17 : vector<1x8xf32> to vector<32x8xf32>
    %20 = arith.mulf %18, %19 : vector<32x8xf32>
    %21 = arith.addf %15, %20 : vector<32x8xf32>
    %22 = vector.extract_strided_slice %3 {offsets = [0, 3], sizes = [32, 1], strides = [1, 1]} : vector<32x4xf32> to vector<32x1xf32>
    %23 = vector.extract_strided_slice %4 {offsets = [3, 0], sizes = [1, 8], strides = [1, 1]} : vector<4x8xf32> to vector<1x8xf32>
    %24 = vector.broadcast %22 : vector<32x1xf32> to vector<32x8xf32>
    %25 = vector.broadcast %23 : vector<1x8xf32> to vector<32x8xf32>
    %26 = arith.mulf %24, %25 : vector<32x8xf32>
    %27 = arith.addf %21, %26 : vector<32x8xf32>
    %c0_4 = arith.constant 0 : index
    %c0_5 = arith.constant 0 : index
    %28 = vector.load %arg3[%c0_4, %c0_5] : memref<32x1xf32, #tpu.memory_space<vmem>>, vector<32x1xf32>
    %cst = arith.constant dense<0.000000e+00> : vector<32xf32>
    %29 = vector.multi_reduction <add>, %27, %cst [1] : vector<32x8xf32> to vector<32xf32>
    %30 = vector.shape_cast %29 : vector<32xf32> to vector<32x1xf32>
    %31 = arith.addf %28, %30 : vector<32x1xf32>
    %c0_6 = arith.constant 0 : index
    %c0_7 = arith.constant 0 : index
    %32 = vector.load %arg3[%c0_6, %c0_7] : memref<32x1xf32, #tpu.memory_space<vmem>>, vector<32x1xf32>
    tpu.vector_store %arg3[%c0_6, %c0_7], %31 {strides = array<i32>} : memref<32x1xf32, #tpu.memory_space<vmem>>, vector<32x1xf32>,
    %c0_8 = arith.constant 0 : index
    %c0_9 = arith.constant 0 : index
    %33 = vector.load %arg4[%c0_8, %c0_9] : memref<32x1xf32, #tpu.memory_space<vmem>>, vector<32x1xf32>
    %34 = arith.mulf %27, %27 : vector<32x8xf32>
    %cst_10 = arith.constant dense<0.000000e+00> : vector<32xf32>
    %35 = vector.multi_reduction <add>, %34, %cst_10 [1] : vector<32x8xf32> to vector<32xf32>
    %36 = vector.shape_cast %35 : vector<32xf32> to vector<32x1xf32>
    %37 = arith.addf %33, %36 : vector<32x1xf32>
    %c0_11 = arith.constant 0 : index
    %c0_12 = arith.constant 0 : index
    %38 = vector.load %arg4[%c0_11, %c0_12] : memref<32x1xf32, #tpu.memory_space<vmem>>, vector<32x1xf32>
    tpu.vector_store %arg4[%c0_11, %c0_12], %37 {strides = array<i32>} : memref<32x1xf32, #tpu.memory_space<vmem>>, vector<32x1xf32>,
    return
  }
  func.func @transform_0(%arg0: i32) -> (i32, i32) {
    %c0_i32 = arith.constant 0 : i32
    %c0_i32_0 = arith.constant 0 : i32
    return %c0_i32, %arg0 : i32, i32
  }
  func.func @transform_1(%arg0: i32) -> (i32, i32) {
    %c0_i32 = arith.constant 0 : i32
    %c0_i32_0 = arith.constant 0 : i32
    %c0_i32_1 = arith.constant 0 : i32
    return %c0_i32, %c0_i32_0 : i32, i32
  }
  func.func @transform_2(%arg0: i32) -> (i32, i32) {
    %c0_i32 = arith.constant 0 : i32
    %c0_i32_0 = arith.constant 0 : i32
    %c0_i32_1 = arith.constant 0 : i32
    return %c0_i32, %c0_i32_0 : i32, i32
  }
  func.func @transform_3(%arg0: i32) -> (i32, i32) {
    %c0_i32 = arith.constant 0 : i32
    %c0_i32_0 = arith.constant 0 : i32
    %c0_i32_1 = arith.constant 0 : i32
    return %c0_i32, %c0_i32_0 : i32, i32
  }
}

</mosaic_0001>

<llo_original>
// kernel: tpu_custom_call.1
$region0: #{tpu_custom_call.1}
  #allocation0 [shape = 'u32[]', space=smem, size = 0x4, offset = 0x4, fixed_abs, tag = 'smem constant byte address 0x4 - core index']
  #allocation1 [shape = 'u32[72,128]{1,0:T(1,128)}', space=vmem, size = 0x9000, scoped, tag = 'internal scratch']
  %s0 = inlined_call_operand.vmem [shape: f32[4,8], index: 0, kind: input, shape index: {}]
  %s1 = inlined_call_operand.vmem [shape: f32[32,4], index: 1, kind: input, shape index: {}]
  %s2 = inlined_call_operand.vmem [shape: f32[32,1], index: 2, kind: output, shape index: {0}]
  %s3 = inlined_call_operand.vmem [shape: f32[32,1], index: 3, kind: output, shape index: {1}]
  %4 = xla_tuple %s2, %s3
  %s5 = sld [smem:[#allocation0]]
  $region30: #{tpu_custom_call.1} parent=0
    _
  %s7 = ssub.s32 1, %s5
  %s8 = scalar_select 0, %s7, %s5
  // Predicated region
  $region2: #{tpu_custom_call.1} parent=0 // pred_check
    _
  $region3: #{tpu_custom_call.1} parent=0 // pred_check_branch
    %10 = sbr.rel (0) target = $region5
  $region4: #{tpu_custom_call.1} parent=0 // pred_region
    _
  $region5: #{tpu_custom_call.1} parent=0 // pred_fallthru
    _
  // Predicated region
  $region6: #{tpu_custom_call.1} parent=0 // pred_check
    _
  $region7: #{tpu_custom_call.1} parent=0 // pred_check_branch
    %12 = sbr.rel (0) target = $region9
  $region8: #{tpu_custom_call.1} parent=0 // pred_region
    _
  $region9: #{tpu_custom_call.1} parent=0 // pred_fallthru
    _
  %p13 = scmp.eq.s32.totalorder 0, 0
  // Predicated region
  $region10: #{tpu_custom_call.1} parent=0 // pred_check
    %p14 = pneg %p13
  $region11: #{tpu_custom_call.1} parent=0 // pred_check_branch
    %16 = sbr.rel (%p14) target = $region13
  $region12: #{tpu_custom_call.1} parent=0 // pred_region
    %vm17 = vcmask 7168
    %18 = vst.msk [vmem:[%s2] sm:$0xff] %vm17, 0.0
    %19 = vst.msk [vmem:[%s2 + $0x8] sm:$0xff] %vm17, 0.0
    %20 = vst.msk [vmem:[%s2 + $0x10] sm:$0xff] %vm17, 0.0
    %21 = vst.msk [vmem:[%s2 + $0x18] sm:$0xff] %vm17, 0.0
    %22 = vst.msk [vmem:[%s3] sm:$0xff] %vm17, 0.0
    %23 = vst.msk [vmem:[%s3 + $0x8] sm:$0xff] %vm17, 0.0
    %24 = vst.msk [vmem:[%s3 + $0x10] sm:$0xff] %vm17, 0.0
    %25 = vst.msk [vmem:[%s3 + $0x18] sm:$0xff] %vm17, 0.0
  $region13: #{tpu_custom_call.1} parent=0 // pred_fallthru
    _
  %v26 = vld [vmem:[%s1] sm:$0xff]
  %v27 = vld [vmem:[%s1 + $0x8] sm:$0xff]
  %v28 = vld [vmem:[%s1 + $0x10] sm:$0xff]
  %v29 = vld [vmem:[%s1 + $0x18] sm:$0xff]
  %v30 = vld [vmem:[%s0] sm:$0xf]
  %32 = vset.pattern.permute.xlu0 0
  %33 = vperm.xlu0 %32, %v26
  %v34 = vpop.permute.xlu0 %33
  %37 = vset.pattern.permute.xlu0 0
  %38 = vperm.xlu0 %37, %v27
  %v39 = vpop.permute.xlu0 %38
  %42 = vset.pattern.permute.xlu0 0
  %43 = vperm.xlu0 %42, %v28
  %v44 = vpop.permute.xlu0 %43
  %47 = vset.pattern.permute.xlu0 0
  %48 = vperm.xlu0 %47, %v29
  %v49 = vpop.permute.xlu0 %48
  %v51 = vperm.slane %v30, 0
  %v52 = vmul.f32 %v34, %v51
  %v53 = vmul.f32 %v39, %v51
  %v54 = vmul.f32 %v44, %v51
  %v55 = vmul.f32 %v49, %v51
  %56 = vset.pattern.permute.xlu0 1
  %57 = vperm.xlu0 %56, %v26
  %v58 = vpop.permute.xlu0 %57
  %60 = vset.pattern.permute.xlu0 1
  %61 = vperm.xlu0 %60, %v27
  %v62 = vpop.permute.xlu0 %61
  %64 = vset.pattern.permute.xlu0 1
  %65 = vperm.xlu0 %64, %v28
  %v66 = vpop.permute.xlu0 %65
  %68 = vset.pattern.permute.xlu0 1
  %69 = vperm.xlu0 %68, %v29
  %v70 = vpop.permute.xlu0 %69
  %v72 = vperm.slane %v30, 1
  %v73 = vmul.f32 %v58, %v72
  %v74 = vmul.f32 %v62, %v72
  %v75 = vmul.f32 %v66, %v72
  %v76 = vmul.f32 %v70, %v72
  %v77 = vadd.f32 %v52, %v73
  %v78 = vadd.f32 %v53, %v74
  %v79 = vadd.f32 %v54, %v75
  %v80 = vadd.f32 %v55, %v76
  %81 = vset.pattern.permute.xlu0 2
  %82 = vperm.xlu0 %81, %v26
  %v83 = vpop.permute.xlu0 %82
  %85 = vset.pattern.permute.xlu0 2
  %86 = vperm.xlu0 %85, %v27
  %v87 = vpop.permute.xlu0 %86
  %89 = vset.pattern.permute.xlu0 2
  %90 = vperm.xlu0 %89, %v28
  %v91 = vpop.permute.xlu0 %90
  %93 = vset.pattern.permute.xlu0 2
  %94 = vperm.xlu0 %93, %v29
  %v95 = vpop.permute.xlu0 %94
  %v97 = vperm.slane %v30, 2
  %v98 = vmul.f32 %v83, %v97
  %v99 = vmul.f32 %v87, %v97
  %v100 = vmul.f32 %v91, %v97
  %v101 = vmul.f32 %v95, %v97
  %v102 = vadd.f32 %v77, %v98
  %v103 = vadd.f32 %v78, %v99
  %v104 = vadd.f32 %v79, %v100
  %v105 = vadd.f32 %v80, %v101
  %106 = vset.pattern.permute.xlu0 3
  %107 = vperm.xlu0 %106, %v26
  %v108 = vpop.permute.xlu0 %107
  %110 = vset.pattern.permute.xlu0 3
  %111 = vperm.xlu0 %110, %v27
  %v112 = vpop.permute.xlu0 %111
  %114 = vset.pattern.permute.xlu0 3
  %115 = vperm.xlu0 %114, %v28
  %v116 = vpop.permute.xlu0 %115
  %118 = vset.pattern.permute.xlu0 3
  %119 = vperm.xlu0 %118, %v29
  %v120 = vpop.permute.xlu0 %119
  %v122 = vperm.slane %v30, 3
  %v123 = vmul.f32 %v108, %v122
  %v124 = vmul.f32 %v112, %v122
  %v125 = vmul.f32 %v116, %v122
  %v126 = vmul.f32 %v120, %v122
  %v127 = vadd.f32 %v102, %v123
  %v128 = vadd.f32 %v103, %v124
  %v129 = vadd.f32 %v104, %v125
  %v130 = vadd.f32 %v105, %v126
  %v131 = vld [vmem:[%s2] sm:$0xff]
  %v132 = vld [vmem:[%s2 + $0x8] sm:$0xff]
  %v133 = vld [vmem:[%s2 + $0x10] sm:$0xff]
  %v134 = vld [vmem:[%s2 + $0x18] sm:$0xff]
  %vm135 = vcmask 64512
  %v136 = vsel %vm135, %v127, 0.0
  %137 = vadd.xlane.f32.xlu0 %v136
  %v138 = vpop.xlane.xlu0 %137
  %v139 = vsel %vm135, %v128, 0.0
  %140 = vadd.xlane.f32.xlu0 %v139
  %v141 = vpop.xlane.xlu0 %140
  %v142 = vsel %vm135, %v129, 0.0
  %143 = vadd.xlane.f32.xlu0 %v142
  %v144 = vpop.xlane.xlu0 %143
  %v145 = vsel %vm135, %v130, 0.0
  %146 = vadd.xlane.f32.xlu0 %v145
  %v147 = vpop.xlane.xlu0 %146
  %v148 = vadd.f32 %v131, %v138
  %v149 = vadd.f32 %v132, %v141
  %v150 = vadd.f32 %v133, %v144
  %v151 = vadd.f32 %v134, %v147
  %vm152 = vcmask 7168
  %153 = vst.msk [vmem:[%s2] sm:$0xff] %vm152, %v148
  %154 = vst.msk [vmem:[%s2 + $0x8] sm:$0xff] %vm152, %v149
  %155 = vst.msk [vmem:[%s2 + $0x10] sm:$0xff] %vm152, %v150
  %156 = vst.msk [vmem:[%s2 + $0x18] sm:$0xff] %vm152, %v151
  %v157 = vld [vmem:[%s3] sm:$0xff]
  %v158 = vld [vmem:[%s3 + $0x8] sm:$0xff]
  %v159 = vld [vmem:[%s3 + $0x10] sm:$0xff]
  %v160 = vld [vmem:[%s3 + $0x18] sm:$0xff]
  %v161 = vmul.f32 %v127, %v127
  %v162 = vmul.f32 %v128, %v128
  %v163 = vmul.f32 %v129, %v129
  %v164 = vmul.f32 %v130, %v130
  %v165 = vsel %vm135, %v161, 0.0
  %166 = vadd.xlane.f32.xlu0 %v165
  %v167 = vpop.xlane.xlu0 %166
  %v168 = vsel %vm135, %v162, 0.0
  %169 = vadd.xlane.f32.xlu0 %v168
  %v170 = vpop.xlane.xlu0 %169
  %v171 = vsel %vm135, %v163, 0.0
  %172 = vadd.xlane.f32.xlu0 %v171
  %v173 = vpop.xlane.xlu0 %172
  %v174 = vsel %vm135, %v164, 0.0
  %175 = vadd.xlane.f32.xlu0 %v174
  %v176 = vpop.xlane.xlu0 %175
  %v177 = vadd.f32 %v157, %v167
  %v178 = vadd.f32 %v158, %v170
  %v179 = vadd.f32 %v159, %v173
  %v180 = vadd.f32 %v160, %v176
  %181 = vst.msk [vmem:[%s3] sm:$0xff] %vm152, %v177
  %182 = vst.msk [vmem:[%s3 + $0x8] sm:$0xff] %vm152, %v178
  %183 = vst.msk [vmem:[%s3 + $0x10] sm:$0xff] %vm152, %v179
  %184 = vst.msk [vmem:[%s3 + $0x18] sm:$0xff] %vm152, %v180
  // Predicated region
  $region14: #{tpu_custom_call.1} parent=0 // pred_check
    _
  $region15: #{tpu_custom_call.1} parent=0 // pred_check_branch
    %186 = sbr.rel (0) target = $region17
  $region16: #{tpu_custom_call.1} parent=0 // pred_region
    _
  $region17: #{tpu_custom_call.1} parent=0 // pred_fallthru
    _
  // Predicated region
  $region18: #{tpu_custom_call.1} parent=0 // pred_check
    _
  $region19: #{tpu_custom_call.1} parent=0 // pred_check_branch
    %188 = sbr.rel (0) target = $region21
  $region20: #{tpu_custom_call.1} parent=0 // pred_region
    _
  $region21: #{tpu_custom_call.1} parent=0 // pred_fallthru
    _
  // Predicated region
  $region22: #{tpu_custom_call.1} parent=0 // pred_check
    _
  $region23: #{tpu_custom_call.1} parent=0 // pred_check_branch
    %190 = sbr.rel (0) target = $region25
  $region24: #{tpu_custom_call.1} parent=0 // pred_region
    _
  $region25: #{tpu_custom_call.1} parent=0 // pred_fallthru
    _
  // Predicated region
  $region26: #{tpu_custom_call.1} parent=0 // pred_check
    _
  $region27: #{tpu_custom_call.1} parent=0 // pred_check_branch
    %192 = sbr.rel (0) target = $region29
  $region28: #{tpu_custom_call.1} parent=0 // pred_region
    _
  $region29: #{tpu_custom_call.1} parent=0 // pred_fallthru
    _

</llo_original>
